<compile_context>
chip_gen: v7x
topology: tpu7x:2x2x1
jax: 0.10.0
libtpu: 0.0.40
codegen_flags: <defaults>
</compile_context>

<pallas_src>
import functools

import jax
import jax.numpy as jnp
from jax.experimental import pallas as pl
from jax.experimental.pallas import tpu as pltpu


def _imageproj_kernel(x_ref, w_ref, b_ref, g_ref, beta_ref, o_ref, acc_ref,
                      *, eps, tt, d):
    """One (token-group, k) grid step of the fused Linear + per-token LayerNorm.

    x_ref    : (B, tk)      image-embedding slice along the contraction dim
    w_ref    : (tk, tt*D)   weight tile for this token-group's output columns
    b_ref    : (1, tt*D)    projection bias slice for this token group
    g_ref    : (1, D)       LayerNorm gamma
    beta_ref : (1, D)       LayerNorm beta
    o_ref    : (B, tt*D)    output slice of the flattened (B, T*D) result
    acc_ref  : (B, tt*D)    f32 accumulator scratch (persists across the K axis)
    """
    k = pl.program_id(1)

    @pl.when(k == 0)
    def _init():
        acc_ref[...] = jnp.zeros_like(acc_ref)

    # Native-dtype operands straight into the MXU; accumulate in f32.
    acc_ref[...] += jnp.dot(x_ref[...], w_ref[...],
                            preferred_element_type=jnp.float32)

    @pl.when(k == pl.num_programs(1) - 1)
    def _finalize():
        y = acc_ref[...] + b_ref[...].astype(jnp.float32)          # (B, tt*D)
        gamma = g_ref[...].astype(jnp.float32)                     # (1, D)
        beta = beta_ref[...].astype(jnp.float32)                   # (1, D)
        # Per-token LayerNorm on static, lane-aligned (multiple-of-128) slices.
        for j in range(tt):
            sl = slice(j * d, (j + 1) * d)
            yj = y[:, sl]                                          # (B, D)
            mean = jnp.mean(yj, axis=-1, keepdims=True)
            centered = yj - mean
            var = jnp.mean(centered * centered, axis=-1, keepdims=True)
            norm = centered * jax.lax.rsqrt(var + eps)             # EUP rsqrt
            o_ref[:, sl] = (norm * gamma + beta).astype(o_ref.dtype)


def _choose_tiles(K, T, D, itemsize, budget_bytes=8 << 20):
    """Pick (token_tile tt, contraction_tile tk).

    Minimizes grid steps subject to: weight tile (tk, tt*D) <= budget_bytes
    (so double-buffering stays well inside scoped VMEM on v5e/v6e/v7x).
    """
    tk_cands = sorted({c for c in (K, 1024, 512, 256, 128)
                       if 0 < c <= K and K % c == 0}, reverse=True)
    if not tk_cands:
        tk_cands = [K]
    tt_cands = [c for c in range(T, 0, -1) if T % c == 0]

    best = None  # ((steps, -tt), tt, tk)
    for tt in tt_cands:
        for tk in tk_cands:  # descending: first fit is the largest tk for this tt
            if tk * tt * D * itemsize <= budget_bytes:
                steps = (T // tt) * (K // tk)
                key = (steps, -tt)
                if best is None or key < best[0]:
                    best = (key, tt, tk)
                break
    if best is None:
        return 1, tk_cands[-1]
    return best[1], best[2]


def image_proj_model(image_embeds, w_t, bias, gamma, beta, *,
                     num_tokens, cross_dim, eps=1e-5, tk=None, tt=None):
    """Fused Linear + reshape + LayerNorm.

    image_embeds: (B, K)        w_t: (K, T*D)  (= PyTorch Linear weight.T)
    bias: (T*D,)                gamma, beta: (D,)
    returns: (B, T, D)
    """
    B, K = image_embeds.shape
    TD = num_tokens * cross_dim
    assert w_t.shape == (K, TD)
    assert cross_dim % 128 == 0, "cross_dim must be lane-aligned (multiple of 128)"

    auto_tt, auto_tk = _choose_tiles(K, num_tokens, cross_dim, w_t.dtype.itemsize)
    tk = auto_tk if tk is None else tk
    tt = auto_tt if tt is None else tt
    assert K % tk == 0, "contraction tile must divide clip_embeddings_dim"
    assert num_tokens % tt == 0, "token tile must divide clip_extra_context_tokens"
    k_steps = K // tk
    t_steps = num_tokens // tt
    ttd = tt * cross_dim

    bias2 = bias.reshape(1, TD)
    gamma2 = gamma.reshape(1, cross_dim)
    beta2 = beta.reshape(1, cross_dim)

    kernel = functools.partial(_imageproj_kernel, eps=eps, tt=tt, d=cross_dim)

    itemsize = image_embeds.dtype.itemsize
    cost = pl.CostEstimate(
        flops=2 * B * K * TD,
        transcendentals=B * num_tokens,  # one rsqrt per (batch, token)
        bytes_accessed=(B * K * itemsize                 # x
                        + K * TD * w_t.dtype.itemsize    # weight (dominant)
                        + TD * bias.dtype.itemsize
                        + 2 * cross_dim * gamma.dtype.itemsize
                        + B * TD * itemsize))            # output

    out_flat = pl.pallas_call(
        kernel,
        out_shape=jax.ShapeDtypeStruct((B, TD), image_embeds.dtype),
        grid_spec=pltpu.PrefetchScalarGridSpec(
            num_scalar_prefetch=0,
            grid=(t_steps, k_steps),
            in_specs=[
                pl.BlockSpec((B, tk), lambda t, k: (0, k)),        # x
                pl.BlockSpec((tk, ttd), lambda t, k: (k, t)),      # weight tile
                pl.BlockSpec((1, ttd), lambda t, k: (0, t)),       # bias slice
                pl.BlockSpec((1, cross_dim), lambda t, k: (0, 0)),  # gamma
                pl.BlockSpec((1, cross_dim), lambda t, k: (0, 0)),  # beta
            ],
            out_specs=pl.BlockSpec((B, ttd), lambda t, k: (0, t)),
            scratch_shapes=[pltpu.VMEM((B, ttd), jnp.float32)],
        ),
        compiler_params=pltpu.CompilerParams(
            dimension_semantics=("parallel", "arbitrary"),
            vmem_limit_bytes=40 * 1024 * 1024,
        ),
        cost_estimate=cost,
    )(image_embeds, w_t, bias2, gamma2, beta2)

    return out_flat.reshape(B, num_tokens, cross_dim)


def _reference(image_embeds, w_t, bias, gamma, beta, *,
               num_tokens, cross_dim, eps=1e-5):
    B = image_embeds.shape[0]
    y = (image_embeds.astype(jnp.float32) @ w_t.astype(jnp.float32)
         + bias.astype(jnp.float32))
    y = y.reshape(B, num_tokens, cross_dim)
    mean = jnp.mean(y, axis=-1, keepdims=True)
    var = jnp.mean((y - mean) ** 2, axis=-1, keepdims=True)
    norm = (y - mean) * jax.lax.rsqrt(var + eps)
    return (norm * gamma + beta).astype(image_embeds.dtype)


if __name__ == "__main__":
    # Small, module-consistent shapes; tiles forced so both the K-accumulator
    # path (2 K-steps) and the multi-token LayerNorm loop (tt=2) are exercised.
    batch = 2
    clip_embeddings_dim = 256       # K
    cross_attention_dim = 128       # D (lane-aligned)
    clip_extra_context_tokens = 4   # T

    key = jax.random.PRNGKey(0)
    k_x, k_w, k_b, k_g, k_beta = jax.random.split(key, 5)

    image_embeds = jax.random.normal(k_x, (batch, clip_embeddings_dim), jnp.float32)

    # Linear(K -> T*D): PyTorch weight is (T*D, K); we pass it pre-transposed.
    w_t = jax.random.normal(
        k_w, (clip_embeddings_dim, clip_extra_context_tokens * cross_attention_dim),
        jnp.float32) * 0.02
    bias = jax.random.normal(
        k_b, (clip_extra_context_tokens * cross_attention_dim,), jnp.float32) * 0.01

    # LayerNorm(D) affine params.
    gamma = 1.0 + 0.1 * jax.random.normal(k_g, (cross_attention_dim,), jnp.float32)
    beta = 0.1 * jax.random.normal(k_beta, (cross_attention_dim,), jnp.float32)

    out = image_proj_model(
        image_embeds, w_t, bias, gamma, beta,
        num_tokens=clip_extra_context_tokens,
        cross_dim=cross_attention_dim,
        tk=128, tt=2)  # grid (2, 2): multi-step K reduction + token grouping
    out = jax.block_until_ready(out)

    ref = _reference(
        image_embeds, w_t, bias, gamma, beta,
        num_tokens=clip_extra_context_tokens,
        cross_dim=cross_attention_dim)

    assert out.shape == (batch, clip_extra_context_tokens, cross_attention_dim)
    assert jnp.allclose(out, ref, atol=1e-4, rtol=1e-4)
    print("KERNEL_OK")
</pallas_src>

<mosaic_0001>
module attributes {stable_mosaic.version = 11 : i64} {
  func.func @_imageproj_kernel(%arg0: i32, %arg1: i32, %arg2: memref<2x128xf32, #tpu.memory_space<vmem>>, %arg3: memref<128x256xf32, #tpu.memory_space<vmem>>, %arg4: memref<1x256xf32, #tpu.memory_space<vmem>>, %arg5: memref<1x128xf32, #tpu.memory_space<vmem>>, %arg6: memref<1x128xf32, #tpu.memory_space<vmem>>, %arg7: memref<2x256xf32, #tpu.memory_space<vmem>>, %arg8: memref<2x256xf32, #tpu.memory_space<vmem>>) attributes {dimension_semantics = [#tpu.dimension_semantics<parallel>, #tpu.dimension_semantics<arbitrary>], iteration_bounds = array<i64: 2, 2>, scalar_prefetch = 0 : i64, scratch_operands = 1 : i64, tpu.core_type = #tpu.core_type<tc>, window_params = [{transform_indices = @transform_0, window_bounds = array<i64: 2, 128>}, {transform_indices = @transform_1, window_bounds = array<i64: 128, 256>}, {transform_indices = @transform_2, window_bounds = array<i64: 1, 256>}, {pipeline_mode = #tpu.pipeline_mode<synchronous>, transform_indices = @transform_3, window_bounds = array<i64: 1, 128>}, {pipeline_mode = #tpu.pipeline_mode<synchronous>, transform_indices = @transform_4, window_bounds = array<i64: 1, 128>}, {transform_indices = @transform_5, window_bounds = array<i64: 2, 256>}]} {
    %c0_i32 = arith.constant 0 : i32
    %0 = arith.cmpi eq, %arg1, %c0_i32 : i32
    %1 = arith.extui %0 : i1 to i32
    %c0_i32_0 = arith.constant 0 : i32
    %2 = arith.cmpi ne, %1, %c0_i32_0 : i32
    scf.if %2 {
      %cst_9 = arith.constant 0.000000e+00 : f32
      %12 = vector.broadcast %cst_9 : f32 to vector<2x256xf32>
      %c0_10 = arith.constant 0 : index
      %c0_11 = arith.constant 0 : index
      %13 = vector.load %arg8[%c0_10, %c0_11] : memref<2x256xf32, #tpu.memory_space<vmem>>, vector<2x256xf32>
      tpu.vector_store %arg8[%c0_10, %c0_11], %12 {strides = array<i32>} : memref<2x256xf32, #tpu.memory_space<vmem>>, vector<2x256xf32>,
    } else {
    }
    %c0 = arith.constant 0 : index
    %c0_1 = arith.constant 0 : index
    %3 = vector.load %arg8[%c0, %c0_1] : memref<2x256xf32, #tpu.memory_space<vmem>>, vector<2x256xf32>
    %c0_2 = arith.constant 0 : index
    %c0_3 = arith.constant 0 : index
    %4 = vector.load %arg2[%c0_2, %c0_3] : memref<2x128xf32, #tpu.memory_space<vmem>>, vector<2x128xf32>
    %c0_4 = arith.constant 0 : index
    %c0_5 = arith.constant 0 : index
    %5 = vector.load %arg3[%c0_4, %c0_5] : memref<128x256xf32, #tpu.memory_space<vmem>>, vector<128x256xf32>
    %cst = arith.constant dense<0.000000e+00> : vector<2x256xf32>
    %6 = tpu.matmul %4, %5, %cst {dimension_numbers = #tpu.dot_dimension_numbers<[1], [0], [0], [1], [0, 0, 1, 1], [], []>} : vector<2x128xf32>, vector<128x256xf32>, vector<2x256xf32> -> vector<2x256xf32>
    %7 = arith.addf %3, %6 : vector<2x256xf32>
    %c0_6 = arith.constant 0 : index
    %c0_7 = arith.constant 0 : index
    %8 = vector.load %arg8[%c0_6, %c0_7] : memref<2x256xf32, #tpu.memory_space<vmem>>, vector<2x256xf32>
    tpu.vector_store %arg8[%c0_6, %c0_7], %7 {strides = array<i32>} : memref<2x256xf32, #tpu.memory_space<vmem>>, vector<2x256xf32>,
    %c1_i32 = arith.constant 1 : i32
    %9 = arith.cmpi eq, %arg1, %c1_i32 : i32
    %10 = arith.extui %9 : i1 to i32
    %c0_i32_8 = arith.constant 0 : i32
    %11 = arith.cmpi ne, %10, %c0_i32_8 : i32
    scf.if %11 {
      %c0_9 = arith.constant 0 : index
      %c0_10 = arith.constant 0 : index
      %12 = vector.load %arg8[%c0_9, %c0_10] : memref<2x256xf32, #tpu.memory_space<vmem>>, vector<2x256xf32>
      %c0_11 = arith.constant 0 : index
      %c0_12 = arith.constant 0 : index
      %13 = vector.load %arg4[%c0_11, %c0_12] : memref<1x256xf32, #tpu.memory_space<vmem>>, vector<1x256xf32>
      %14 = vector.broadcast %13 : vector<1x256xf32> to vector<2x256xf32>
      %15 = arith.addf %12, %14 : vector<2x256xf32>
      %c0_13 = arith.constant 0 : index
      %c0_14 = arith.constant 0 : index
      %16 = vector.load %arg5[%c0_13, %c0_14] : memref<1x128xf32, #tpu.memory_space<vmem>>, vector<1x128xf32>
      %c0_15 = arith.constant 0 : index
      %c0_16 = arith.constant 0 : index
      %17 = vector.load %arg6[%c0_15, %c0_16] : memref<1x128xf32, #tpu.memory_space<vmem>>, vector<1x128xf32>
      %18 = vector.extract_strided_slice %15 {offsets = [0, 0], sizes = [2, 128], strides = [1, 1]} : vector<2x256xf32> to vector<2x128xf32>
      %cst_17 = arith.constant dense<0.000000e+00> : vector<2xf32>
      %19 = vector.multi_reduction <add>, %18, %cst_17 [1] : vector<2x128xf32> to vector<2xf32>
      %20 = vector.shape_cast %19 : vector<2xf32> to vector<2x1xf32>
      %cst_18 = arith.constant 1.280000e+02 : f32
      %21 = vector.broadcast %cst_18 : f32 to vector<2x1xf32>
      %22 = arith.divf %20, %21 : vector<2x1xf32>
      %23 = vector.broadcast %22 : vector<2x1xf32> to vector<2x128xf32>
      %24 = arith.subf %18, %23 : vector<2x128xf32>
      %25 = arith.mulf %24, %24 : vector<2x128xf32>
      %cst_19 = arith.constant dense<0.000000e+00> : vector<2xf32>
      %26 = vector.multi_reduction <add>, %25, %cst_19 [1] : vector<2x128xf32> to vector<2xf32>
      %27 = vector.shape_cast %26 : vector<2xf32> to vector<2x1xf32>
      %cst_20 = arith.constant 1.280000e+02 : f32
      %28 = vector.broadcast %cst_20 : f32 to vector<2x1xf32>
      %29 = arith.divf %27, %28 : vector<2x1xf32>
      %cst_21 = arith.constant 9.99999974E-6 : f32
      %30 = vector.broadcast %cst_21 : f32 to vector<2x1xf32>
      %31 = arith.addf %29, %30 : vector<2x1xf32>
      %32 = math.rsqrt %31 : vector<2x1xf32>
      %33 = vector.broadcast %32 : vector<2x1xf32> to vector<2x128xf32>
      %34 = arith.mulf %24, %33 : vector<2x128xf32>
      %35 = vector.broadcast %16 : vector<1x128xf32> to vector<2x128xf32>
      %36 = arith.mulf %34, %35 : vector<2x128xf32>
      %37 = vector.broadcast %17 : vector<1x128xf32> to vector<2x128xf32>
      %38 = arith.addf %36, %37 : vector<2x128xf32>
      %c0_22 = arith.constant 0 : index
      %c0_23 = arith.constant 0 : index
      %39 = vector.load %arg7[%c0_22, %c0_23] : memref<2x256xf32, #tpu.memory_space<vmem>>, vector<2x128xf32>
      tpu.vector_store %arg7[%c0_22, %c0_23], %38 {strides = array<i32>} : memref<2x256xf32, #tpu.memory_space<vmem>>, vector<2x128xf32>,
      %40 = vector.extract_strided_slice %15 {offsets = [0, 128], sizes = [2, 128], strides = [1, 1]} : vector<2x256xf32> to vector<2x128xf32>
      %cst_24 = arith.constant dense<0.000000e+00> : vector<2xf32>
      %41 = vector.multi_reduction <add>, %40, %cst_24 [1] : vector<2x128xf32> to vector<2xf32>
      %42 = vector.shape_cast %41 : vector<2xf32> to vector<2x1xf32>
      %cst_25 = arith.constant 1.280000e+02 : f32
      %43 = vector.broadcast %cst_25 : f32 to vector<2x1xf32>
      %44 = arith.divf %42, %43 : vector<2x1xf32>
      %45 = vector.broadcast %44 : vector<2x1xf32> to vector<2x128xf32>
      %46 = arith.subf %40, %45 : vector<2x128xf32>
      %47 = arith.mulf %46, %46 : vector<2x128xf32>
      %cst_26 = arith.constant dense<0.000000e+00> : vector<2xf32>
      %48 = vector.multi_reduction <add>, %47, %cst_26 [1] : vector<2x128xf32> to vector<2xf32>
      %49 = vector.shape_cast %48 : vector<2xf32> to vector<2x1xf32>
      %cst_27 = arith.constant 1.280000e+02 : f32
      %50 = vector.broadcast %cst_27 : f32 to vector<2x1xf32>
      %51 = arith.divf %49, %50 : vector<2x1xf32>
      %cst_28 = arith.constant 9.99999974E-6 : f32
      %52 = vector.broadcast %cst_28 : f32 to vector<2x1xf32>
      %53 = arith.addf %51, %52 : vector<2x1xf32>
      %54 = math.rsqrt %53 : vector<2x1xf32>
      %55 = vector.broadcast %54 : vector<2x1xf32> to vector<2x128xf32>
      %56 = arith.mulf %46, %55 : vector<2x128xf32>
      %57 = vector.broadcast %16 : vector<1x128xf32> to vector<2x128xf32>
      %58 = arith.mulf %56, %57 : vector<2x128xf32>
      %59 = vector.broadcast %17 : vector<1x128xf32> to vector<2x128xf32>
      %60 = arith.addf %58, %59 : vector<2x128xf32>
      %c0_29 = arith.constant 0 : index
      %c128 = arith.constant 128 : index
      %61 = vector.load %arg7[%c0_29, %c128] : memref<2x256xf32, #tpu.memory_space<vmem>>, vector<2x128xf32>
      tpu.vector_store %arg7[%c0_29, %c128], %60 {strides = array<i32>} : memref<2x256xf32, #tpu.memory_space<vmem>>, vector<2x128xf32>,
    } else {
    }
    return
  }
  func.func @transform_0(%arg0: i32, %arg1: i32) -> (i32, i32) {
    %c0_i32 = arith.constant 0 : i32
    %c0_i32_0 = arith.constant 0 : i32
    return %c0_i32, %arg1 : i32, i32
  }
  func.func @transform_1(%arg0: i32, %arg1: i32) -> (i32, i32) {
    %c0_i32 = arith.constant 0 : i32
    return %arg1, %arg0 : i32, i32
  }
  func.func @transform_2(%arg0: i32, %arg1: i32) -> (i32, i32) {
    %c0_i32 = arith.constant 0 : i32
    %c0_i32_0 = arith.constant 0 : i32
    return %c0_i32, %arg0 : i32, i32
  }
  func.func @transform_3(%arg0: i32, %arg1: i32) -> (i32, i32) {
    %c0_i32 = arith.constant 0 : i32
    %c0_i32_0 = arith.constant 0 : i32
    %c0_i32_1 = arith.constant 0 : i32
    return %c0_i32, %c0_i32_0 : i32, i32
  }
  func.func @transform_4(%arg0: i32, %arg1: i32) -> (i32, i32) {
    %c0_i32 = arith.constant 0 : i32
    %c0_i32_0 = arith.constant 0 : i32
    %c0_i32_1 = arith.constant 0 : i32
    return %c0_i32, %c0_i32_0 : i32, i32
  }
  func.func @transform_5(%arg0: i32, %arg1: i32) -> (i32, i32) {
    %c0_i32 = arith.constant 0 : i32
    %c0_i32_0 = arith.constant 0 : i32
    return %c0_i32, %arg0 : i32, i32
  }
}

</mosaic_0001>

<llo_original>
// kernel: tpu_custom_call.1
$region0: #{tpu_custom_call.1}
  #allocation0 [shape = 'u32[]', space=smem, size = 0x4, offset = 0x4, fixed_abs, tag = 'smem constant byte address 0x4 - core index']
  #allocation1 [shape = 'u32[144,128]{1,0:T(1,128)}', space=vmem, size = 0x12000, scoped, tag = 'internal scratch']
  #allocation2 [shape = 'f32[2,256]{1,0:T(2,128)}', space=vmem, size = 0x800, scoped, tag = 'scratch operand']
  %s0 = inlined_call_operand.hbm [shape: f32[2,256], index: 0, kind: input, shape index: {}]
  %s1 = inlined_call_operand.hbm [shape: f32[256,512], index: 1, kind: input, shape index: {}]
  %s2 = inlined_call_operand.vmem [shape: f32[1,512], index: 2, kind: input, shape index: {}]
  %s3 = inlined_call_operand.vmem [shape: f32[1,128], index: 3, kind: input, shape index: {}]
  %s4 = inlined_call_operand.vmem [shape: f32[1,128], index: 4, kind: input, shape index: {}]
  %s5 = inlined_call_operand.hbm [shape: f32[2,512], index: 5, kind: output, shape index: {}]
  %s6 = sld [smem:[#allocation0]]
  $region69: #{tpu_custom_call.1} parent=0
    _
  %s8 = ssub.s32 1, %s6
  %s9 = scalar_select 0, %s8, %s6
  $region1: #{tpu_custom_call.1} parent=0
    #allocation3 [shape = 'u8[2048]{0}', space=vmem, size = 0x800, scoped, tag = 'input window, operand 0']
    #allocation4 [shape = 's32[2]{0}', space=sflag, size = 0x8, scoped, tag = 'scoped memory for tpu_custom_call.1']
    #allocation5 [shape = 's32[2]{0}', space=sflag, size = 0x8, scoped, tag = 'scoped memory for tpu_custom_call.1']
    #allocation6 [shape = 'u8[262144]{0}', space=vmem, size = 0x40000, scoped, tag = 'input window, operand 1']
    #allocation7 [shape = 's32[2]{0}', space=sflag, size = 0x8, scoped, tag = 'scoped memory for tpu_custom_call.1']
    #allocation8 [shape = 'u8[4096]{0}', space=vmem, size = 0x1000, scoped, tag = 'output window, operand 0']
    %10 = vsyncpa [#allocation4], 0
    %s11 = scalar_lea.sflag [#allocation4], 1
    %12 = vsyncpa %s11, 0
    %13 = vsyncpa [#allocation7], 0
    %s14 = scalar_lea.sflag [#allocation7], 1
    %15 = vsyncpa %s14, 0
    %16 = vsyncpa [#allocation5], 0
    %s17 = scalar_lea.sflag [#allocation5], 1
    %18 = vsyncpa %s17, 0
    loop: start=0, step=1, limit=6
    $region2: #{tpu_custom_call.1} parent=1 // loop_pre_header
      _
    $region3: #{tpu_custom_call.1} parent=1 // loop_header
      %s20 = sphi 0, %s24
      %p21 = scmp.ge.s32.totalorder %s20, 6
      %s27 = sphi 0, %s39
      %s28 = sphi 0, %s35
      %s29 = sphi 0, %s27
      %s30 = sphi 0, %s28
      %s31 = sphi 0, %s29
      %s32 = sphi 0, %s30
      %s42 = sphi 0, %s44
      %s45 = sphi 0, %s42
      %s46 = sphi 0, %s45
      %s62 = sphi 0, %s46
      %s70 = sphi 0, %s72
      %s73 = sphi 0, %s70
      %s74 = sphi 0, %s73
      %s90 = sphi 0, %s74
      %s96 = sphi 0, %s98
      %s99 = sphi 0, %s96
      %s100 = sphi 0, %s99
      %s116 = sphi 0, %s100
      %s120 = sphi 0, %s120
      %s122 = sphi 0, %s120
      %s123 = sphi 0, %s122
      %s137 = sphi 0, %s123
      %s141 = sphi 0, %s141
      %s143 = sphi 0, %s141
      %s144 = sphi 0, %s143
      %s158 = sphi 0, %s144
      %s164 = sphi 0, %s166
      %s167 = sphi 0, %s164
      %s168 = sphi 0, %s167
      %s184 = sphi 0, %s168
    $region4: #{tpu_custom_call.1} parent=1 // loop_header_branch
      %23 = sbr.rel (%p21) target = $region8
    $region5: #{tpu_custom_call.1} parent=1 // loop_body
      %s25 = ssub.s32 %s20, 1
      %s26 = ssub.s32 %s20, 2
      %s33 = sadd.s32 1, %s28
      %p34 = scmp.ge.s32.totalorder %s33, 2
      %s35 = scalar_select %p34, 0, %s33
      %s36 = sadd.s32 1, %s27
      %s37 = scalar_select %p34, %s36, %s27
      %p38 = scmp.ge.s32.totalorder %s37, 2
      %s39 = scalar_select %p38, 0, %s37
      %s40 = ssub.s32 %s28, %s35
      %p41 = scmp.eq.s32.totalorder %s40, 0
      %s43 = sadd.s32 %s42, 1
      %s44 = scalar_select %p41, %s42, %s43
      %p47 = pneg %p41
      %p48 = scmp.eq.s32.totalorder %s20, 3
      %p49 = por %p47, %p48
      %p50 = scmp.ne.s32.totalorder %s42, %s45
      %p51 = scmp.eq.s32.totalorder %s20, 0
      %p52 = por %p50, %p51
      %p53 = scmp.ne.s32.totalorder %s42, %s45
      %p54 = scmp.eq.s32.totalorder %s25, 3
      %p55 = por %p53, %p54
      %p56 = scmp.ne.s32.totalorder %s45, %s46
      %p57 = scmp.eq.s32.totalorder %s25, 0
      %p58 = por %p56, %p57
      %p59 = scmp.ne.s32.totalorder %s45, %s46
      %p60 = scmp.eq.s32.totalorder %s26, 3
      %p61 = por %p59, %p60
      %p63 = scmp.ne.s32.totalorder %s46, %s62
      %p64 = scmp.eq.s32.totalorder %s26, 0
      %p65 = por %p63, %p64
      %s66 = ssub.s32 %s28, %s35
      %s67 = ssub.s32 %s27, %s39
      %s68 = sor.u32 %s66, %s67
      %p69 = scmp.eq.s32.totalorder %s68, 0
      %s71 = sadd.s32 %s70, 1
      %s72 = scalar_select %p69, %s70, %s71
      %p75 = pneg %p69
      %p76 = scmp.eq.s32.totalorder %s20, 3
      %p77 = por %p75, %p76
      %p78 = scmp.ne.s32.totalorder %s70, %s73
      %p79 = scmp.eq.s32.totalorder %s20, 0
      %p80 = por %p78, %p79
      %p81 = scmp.ne.s32.totalorder %s70, %s73
      %p82 = scmp.eq.s32.totalorder %s25, 3
      %p83 = por %p81, %p82
      %p84 = scmp.ne.s32.totalorder %s73, %s74
      %p85 = scmp.eq.s32.totalorder %s25, 0
      %p86 = por %p84, %p85
      %p87 = scmp.ne.s32.totalorder %s73, %s74
      %p88 = scmp.eq.s32.totalorder %s26, 3
      %p89 = por %p87, %p88
      %p91 = scmp.ne.s32.totalorder %s74, %s90
      %p92 = scmp.eq.s32.totalorder %s26, 0
      %p93 = por %p91, %p92
      %s94 = ssub.s32 %s27, %s39
      %p95 = scmp.eq.s32.totalorder %s94, 0
      %s97 = sadd.s32 %s96, 1
      %s98 = scalar_select %p95, %s96, %s97
      %p101 = pneg %p95
      %p102 = scmp.eq.s32.totalorder %s20, 3
      %p103 = por %p101, %p102
      %p104 = scmp.ne.s32.totalorder %s96, %s99
      %p105 = scmp.eq.s32.totalorder %s20, 0
      %p106 = por %p104, %p105
      %p107 = scmp.ne.s32.totalorder %s96, %s99
      %p108 = scmp.eq.s32.totalorder %s25, 3
      %p109 = por %p107, %p108
      %p110 = scmp.ne.s32.totalorder %s99, %s100
      %p111 = scmp.eq.s32.totalorder %s25, 0
      %p112 = por %p110, %p111
      %p113 = scmp.ne.s32.totalorder %s99, %s100
      %p114 = scmp.eq.s32.totalorder %s26, 3
      %p115 = por %p113, %p114
      %p117 = scmp.ne.s32.totalorder %s100, %s116
      %p118 = scmp.eq.s32.totalorder %s26, 0
      %p119 = por %p117, %p118
      %s121 = sadd.s32 %s120, 1
      %p124 = scmp.eq.s32.totalorder %s20, 3
      %p125 = scmp.ne.s32.totalorder %s120, %s122
      %p126 = scmp.eq.s32.totalorder %s20, 0
      %p127 = por %p125, %p126
      %p128 = scmp.ne.s32.totalorder %s120, %s122
      %p129 = scmp.eq.s32.totalorder %s25, 3
      %p130 = por %p128, %p129
      %p131 = scmp.ne.s32.totalorder %s122, %s123
      %p132 = scmp.eq.s32.totalorder %s25, 0
      %p133 = por %p131, %p132
      %p134 = scmp.ne.s32.totalorder %s122, %s123
      %p135 = scmp.eq.s32.totalorder %s26, 3
      %p136 = por %p134, %p135
      %p138 = scmp.ne.s32.totalorder %s123, %s137
      %p139 = scmp.eq.s32.totalorder %s26, 0
      %p140 = por %p138, %p139
      %s142 = sadd.s32 %s141, 1
      %p145 = scmp.eq.s32.totalorder %s20, 3
      %p146 = scmp.ne.s32.totalorder %s141, %s143
      %p147 = scmp.eq.s32.totalorder %s20, 0
      %p148 = por %p146, %p147
      %p149 = scmp.ne.s32.totalorder %s141, %s143
      %p150 = scmp.eq.s32.totalorder %s25, 3
      %p151 = por %p149, %p150
      %p152 = scmp.ne.s32.totalorder %s143, %s144
      %p153 = scmp.eq.s32.totalorder %s25, 0
      %p154 = por %p152, %p153
      %p155 = scmp.ne.s32.totalorder %s143, %s144
      %p156 = scmp.eq.s32.totalorder %s26, 3
      %p157 = por %p155, %p156
      %p159 = scmp.ne.s32.totalorder %s144, %s158
      %p160 = scmp.eq.s32.totalorder %s26, 0
      %p161 = por %p159, %p160
      %s162 = ssub.s32 %s27, %s39
      %p163 = scmp.eq.s32.totalorder %s162, 0
      %s165 = sadd.s32 %s164, 1
      %s166 = scalar_select %p163, %s164, %s165
      %p169 = pneg %p163
      %p170 = scmp.eq.s32.totalorder %s20, 3
      %p171 = por %p169, %p170
      %p172 = scmp.ne.s32.totalorder %s164, %s167
      %p173 = scmp.eq.s32.totalorder %s20, 0
      %p174 = por %p172, %p173
      %p175 = scmp.ne.s32.totalorder %s164, %s167
      %p176 = scmp.eq.s32.totalorder %s25, 3
      %p177 = por %p175, %p176
      %p178 = scmp.ne.s32.totalorder %s167, %s168
      %p179 = scmp.eq.s32.totalorder %s25, 0
      %p180 = por %p178, %p179
      %p181 = scmp.ne.s32.totalorder %s167, %s168
      %p182 = scmp.eq.s32.totalorder %s26, 3
      %p183 = por %p181, %p182
      %p185 = scmp.ne.s32.totalorder %s168, %s184
      %p186 = scmp.eq.s32.totalorder %s26, 0
      %p187 = por %p185, %p186
      %p188 = scmp.le.s32.totalorder 1, %s20
      %p189 = scmp.lt.s32.totalorder %s20, 5
      %p190 = pnand %p188, %p189
      %p191 = pneg %p190
      // Predicated region
      $region9: #{tpu_custom_call.1} parent=5 // pred_check
        _
      $region10: #{tpu_custom_call.1} parent=5 // pred_check_branch
        %193 = sbr.rel (%p190) target = $region12
      $region11: #{tpu_custom_call.1} parent=5 // pred_region
        %s194 = ssub.s32 %s20, 1
        // Predicated region
        $region13: #{tpu_custom_call.1} parent=11 // pred_check
          %p195 = pneg %p133
        $region14: #{tpu_custom_call.1} parent=11 // pred_check_branch
          %197 = sbr.rel (%p195) target = $region16
        $region15: #{tpu_custom_call.1} parent=11 // pred_region
          _
        $region16: #{tpu_custom_call.1} parent=11 // pred_fallthru
          _
        // Predicated region
        $region17: #{tpu_custom_call.1} parent=11 // pred_check
          %p198 = pneg %p154
        $region18: #{tpu_custom_call.1} parent=11 // pred_check_branch
          %200 = sbr.rel (%p198) target = $region20
        $region19: #{tpu_custom_call.1} parent=11 // pred_region
          _
        $region20: #{tpu_custom_call.1} parent=11 // pred_fallthru
          _
      $region12: #{tpu_custom_call.1} parent=5 // pred_fallthru
        _
      %p201 = scmp.lt.s32.totalorder %s20, 4
      // Predicated region
      $region21: #{tpu_custom_call.1} parent=5 // pred_check
        %p202 = pneg %p201
      $region22: #{tpu_custom_call.1} parent=5 // pred_check_branch
        %204 = sbr.rel (%p202) target = $region24
      $region23: #{tpu_custom_call.1} parent=5 // pred_region
        // Predicated region
        $region25: #{tpu_custom_call.1} parent=23 // pred_check
          %p205 = pneg %p52
        $region26: #{tpu_custom_call.1} parent=23 // pred_check_branch
          %207 = sbr.rel (%p205) target = $region28
        $region27: #{tpu_custom_call.1} parent=23 // pred_region
          %s208 = sand.u32 %s42, 1
          %s209 = scalar_lea.sflag [#allocation4], %s208
          %s210 = sand.u32 %s42, 1
          %s211 = smul.addr %s210, 2
          %s212 = scalar_lea.vmem [#allocation3], %s211
          %s214 = ssub.s32 32, 32
          %215 = vsyncadd %s209, %s214
          %s216 = smul.addr %s28, 32
          %s217 = scalar_lea.hbm %s0, %s216
          %s219 = sshll.u32 %s212, 4
          %s220 = int_to_ptr.vmem [resolvable:$true] %s219
          %222 = dma.hbm_to_vmem [thread:$0]  %s217, 32, %s220, %s209
        $region28: #{tpu_custom_call.1} parent=23 // pred_fallthru
          _
        // Predicated region
        $region29: #{tpu_custom_call.1} parent=23 // pred_check
          %p223 = pneg %p80
        $region30: #{tpu_custom_call.1} parent=23 // pred_check_branch
          %225 = sbr.rel (%p223) target = $region32
        $region31: #{tpu_custom_call.1} parent=23 // pred_region
          %s226 = sand.u32 %s70, 1
          %s227 = scalar_lea.sflag [#allocation7], %s226
          %s228 = sand.u32 %s70, 1
          %s229 = smul.addr %s228, 256
          %s230 = scalar_lea.vmem [#allocation6], %s229
          %s231 = smul.u32 16, %s28
          %s232 = smul.u32 2, %s27
          %s234 = ssub.s32 4096, 4096
          %235 = vsyncadd %s227, %s234
          %s236 = smul.addr %s231, 4
          %s237 = sadd.s32 %s232, %s236
          %s238 = smul.addr %s237, 128
          %s239 = scalar_lea.hbm %s1, %s238
          %s240 = sshll.u32 %s230, 4
          %s241 = int_to_ptr.vmem [resolvable:$true] %s240
          %246 = dma.hbm_to_vmem [thread:$0]  %s239, 4096, %s241, %s227, 512, 256, 16
        $region32: #{tpu_custom_call.1} parent=23 // pred_fallthru
          _
        // Predicated region
        $region33: #{tpu_custom_call.1} parent=23 // pred_check
          %p247 = pneg %p106
        $region34: #{tpu_custom_call.1} parent=23 // pred_check_branch
          %249 = sbr.rel (%p247) target = $region36
        $region35: #{tpu_custom_call.1} parent=23 // pred_region
          %s250 = smul.u32 2, %s27
          %p251 = scmp.lt.s32.totalorder %s250, 3
          %s252 = scalar_select %p251, %s250, 3
          %s253 = scalar_lea.vmem %s2, %s252
          %s254 = smul.u32 2, %s27
        $region36: #{tpu_custom_call.1} parent=23 // pred_fallthru
          _
      $region24: #{tpu_custom_call.1} parent=5 // pred_fallthru
        _
      %p255 = scmp.le.s32.totalorder 1, %s20
      %p256 = scmp.lt.s32.totalorder %s20, 5
      %p257 = pnand %p255, %p256
      %p258 = pneg %p257
      // Predicated region
      $region37: #{tpu_custom_call.1} parent=5 // pred_check
        _
      $region38: #{tpu_custom_call.1} parent=5 // pred_check_branch
        %260 = sbr.rel (%p257) target = $region40
      $region39: #{tpu_custom_call.1} parent=5 // pred_region
        %s261 = ssub.s32 %s20, 1
        %s262 = sand.u32 %s45, 1
        %s263 = scalar_lea.sflag [#allocation4], %s262
        %s264 = sand.u32 %s45, 1
        %s265 = smul.addr %s264, 2
        %s266 = scalar_lea.vmem [#allocation3], %s265
        // Predicated region
        $region41: #{tpu_custom_call.1} parent=39 // pred_check
          %p267 = pneg %p58
        $region42: #{tpu_custom_call.1} parent=39 // pred_check_branch
          %269 = sbr.rel (%p267) target = $region44
        $region43: #{tpu_custom_call.1} parent=39 // pred_region
          %270 = dma.done %s263, 32
        $region44: #{tpu_custom_call.1} parent=39 // pred_fallthru
          _
        %s271 = sand.u32 %s73, 1
        %s272 = scalar_lea.sflag [#allocation7], %s271
        %s273 = sand.u32 %s73, 1
        %s274 = smul.addr %s273, 256
        %s275 = scalar_lea.vmem [#allocation6], %s274
        // Predicated region
        $region45: #{tpu_custom_call.1} parent=39 // pred_check
          %p276 = pneg %p86
        $region46: #{tpu_custom_call.1} parent=39 // pred_check_branch
          %278 = sbr.rel (%p276) target = $region48
        $region47: #{tpu_custom_call.1} parent=39 // pred_region
          %279 = dma.done %s272, 4096
        $region48: #{tpu_custom_call.1} parent=39 // pred_fallthru
          _
        %s280 = sand.u32 %s45, 1
        %s281 = scalar_lea.sflag [#allocation4], %s280
        %s282 = sand.u32 %s45, 1
        %s283 = smul.addr %s282, 2
        %s284 = scalar_lea.vmem [#allocation3], %s283
        %p285 = pneg %p58
        %p286 = pneg %p55
        %s287 = sand.u32 %s73, 1
        %s288 = scalar_lea.sflag [#allocation7], %s287
        %s289 = sand.u32 %s73, 1
        %s290 = smul.addr %s289, 256
        %s291 = scalar_lea.vmem [#allocation6], %s290
        %p292 = pneg %p86
        %p293 = pneg %p83
        %s294 = smul.u32 2, %s29
        %p295 = scmp.lt.s32.totalorder %s294, 3
        %s296 = scalar_select %p295, %s294, 3
        %s297 = scalar_lea.vmem %s2, %s296
        %p298 = pneg %p112
        %p299 = pneg %p109
        %p300 = pneg %p133
        %p301 = pneg %p130
        %p302 = pneg %p154
        %p303 = pneg %p151
        %p304 = pneg %p180
        %p305 = pneg %p177
        %s306 = sand.u32 %s167, 1
        %s307 = scalar_lea.sflag [#allocation5], %s306
        %s308 = sand.u32 %s167, 1
        %s309 = smul.addr %s308, 4
        %s310 = scalar_lea.vmem [#allocation8], %s309
        %s311 = smul.u32 16, %s30
        %s312 = smul.u32 2, %s29
        %s313 = smul.u32 2, %s29
        %p314 = scmp.lt.s32.totalorder %s313, 3
        %s315 = scalar_select %p314, %s313, 3
        %s316 = scalar_lea.vmem %s2, %s315
        %s317 = smul.u32 2, %s29
        %s318 = smul.u32 2, %s29
        %p319 = scmp.eq.s32.totalorder %s30, 0
        // Predicated region
        $region49: #{tpu_custom_call.1} parent=39 // pred_check
          %p320 = pneg %p319
        $region50: #{tpu_custom_call.1} parent=39 // pred_check_branch
          %322 = sbr.rel (%p320) target = $region52
        $region51: #{tpu_custom_call.1} parent=39 // pred_region
          %323 = vst [vmem:[#allocation2] sm:$0xf] 0.0
        $region52: #{tpu_custom_call.1} parent=39 // pred_fallthru
          _
        %v324 = vld [vmem:[#allocation2] sm:$0xf]
        %v325 = vld [vmem:[%s266] sm:$0x3]
        %v326 = vld [vmem:[%s275] sm:$0xff]
        %v327 = vld [vmem:[%s275 + $0x8] sm:$0xff]
        %v328 = vld [vmem:[%s275 + $0x10] sm:$0xff]
        %v329 = vld [vmem:[%s275 + $0x18] sm:$0xff]
        %v330 = vld [vmem:[%s275 + $0x20] sm:$0xff]
        %v331 = vld [vmem:[%s275 + $0x28] sm:$0xff]
        %v332 = vld [vmem:[%s275 + $0x30] sm:$0xff]
        %v333 = vld [vmem:[%s275 + $0x38] sm:$0xff]
        %v334 = vld [vmem:[%s275 + $0x40] sm:$0xff]
        %v335 = vld [vmem:[%s275 + $0x48] sm:$0xff]
        %v336 = vld [vmem:[%s275 + $0x50] sm:$0xff]
        %v337 = vld [vmem:[%s275 + $0x58] sm:$0xff]
        %v338 = vld [vmem:[%s275 + $0x60] sm:$0xff]
        %v339 = vld [vmem:[%s275 + $0x68] sm:$0xff]
        %v340 = vld [vmem:[%s275 + $0x70] sm:$0xff]
        %v341 = vld [vmem:[%s275 + $0x78] sm:$0xff]
        %v342 = vld [vmem:[%s275 + $0x80] sm:$0xff]
        %v343 = vld [vmem:[%s275 + $0x88] sm:$0xff]
        %v344 = vld [vmem:[%s275 + $0x90] sm:$0xff]
        %v345 = vld [vmem:[%s275 + $0x98] sm:$0xff]
        %v346 = vld [vmem:[%s275 + $0xa0] sm:$0xff]
        %v347 = vld [vmem:[%s275 + $0xa8] sm:$0xff]
        %v348 = vld [vmem:[%s275 + $0xb0] sm:$0xff]
        %v349 = vld [vmem:[%s275 + $0xb8] sm:$0xff]
        %v350 = vld [vmem:[%s275 + $0xc0] sm:$0xff]
        %v351 = vld [vmem:[%s275 + $0xc8] sm:$0xff]
        %v352 = vld [vmem:[%s275 + $0xd0] sm:$0xff]
        %v353 = vld [vmem:[%s275 + $0xd8] sm:$0xff]
        %v354 = vld [vmem:[%s275 + $0xe0] sm:$0xff]
        %v355 = vld [vmem:[%s275 + $0xe8] sm:$0xff]
        %v356 = vld [vmem:[%s275 + $0xf0] sm:$0xff]
        %v357 = vld [vmem:[%s275 + $0xf8] sm:$0xff]
        %358 = vmatprep.subr.mxu0 %v327
        %359 = vmatpush1.msra.mxu0 %v326
        %360 = vmatprep.subr.mxu0 %v329
        %361 = vmatpush1.msra.mxu0 %v328
        %362 = vmatprep.subr.mxu0 %v331
        %363 = vmatpush1.msra.mxu0 %v330
        %364 = vmatprep.subr.mxu0 %v333
        %365 = vmatpush1.msra.mxu0 %v332
        %366 = vmatprep.subr.mxu0 %v335
        %367 = vmatpush1.msra.mxu0 %v334
        %368 = vmatprep.subr.mxu0 %v337
        %369 = vmatpush1.msra.mxu0 %v336
        %370 = vmatprep.subr.mxu0 %v339
        %371 = vmatpush1.msra.mxu0 %v338
        %372 = vmatprep.subr.mxu0 %v341
        %373 = vmatpush1.msra.mxu0 %v340
        %374 = vmatprep.subr.mxu0 %v343
        %375 = vmatpush1.msra.mxu0 %v342
        %376 = vmatprep.subr.mxu0 %v345
        %377 = vmatpush1.msra.mxu0 %v344
        %378 = vmatprep.subr.mxu0 %v347
        %379 = vmatpush1.msra.mxu0 %v346
        %380 = vmatprep.subr.mxu0 %v349
        %381 = vmatpush1.msra.mxu0 %v348
        %382 = vmatprep.subr.mxu0 %v351
        %383 = vmatpush1.msra.mxu0 %v350
        %384 = vmatprep.subr.mxu0 %v353
        %385 = vmatpush1.msra.mxu0 %v352
        %386 = vmatprep.subr.mxu0 %v355
        %387 = vmatpush1.msra.mxu0 %v354
        %388 = vmatprep.subr.mxu0 %v357
        %389 = vmatpush1.msra.mxu0 %v356
        %390 = vmatprep.subr.mxu0 0.0
        %391 = vmatpush1.msra.mxu0 0.0
        %392 = vmatprep.subr.mxu0 0.0
        %393 = vmatpush1.msra.mxu0 0.0
        %394 = vmatprep.subr.mxu0 0.0
        %395 = vmatpush1.msra.mxu0 0.0
        %396 = vmatprep.subr.mxu0 0.0
        %397 = vmatpush1.msra.mxu0 0.0
        %398 = vmatprep.subr.mxu0 0.0
        %399 = vmatpush1.msra.mxu0 0.0
        %400 = vmatprep.subr.mxu0 0.0
        %401 = vmatpush1.msra.mxu0 0.0
        %402 = vmatprep.subr.mxu0 0.0
        %403 = vmatpush1.msra.mxu0 0.0
        %404 = vmatprep.subr.mxu0 0.0
        %405 = vmatpush1.msra.mxu0 0.0
        %406 = vmatprep.subr.mxu0 0.0
        %407 = vmatpush1.msra.mxu0 0.0
        %408 = vmatprep.subr.mxu0 0.0
        %409 = vmatpush1.msra.mxu0 0.0
        %410 = vmatprep.subr.mxu0 0.0
        %411 = vmatpush1.msra.mxu0 0.0
        %412 = vmatprep.subr.mxu0 0.0
        %413 = vmatpush1.msra.mxu0 0.0
        %414 = vmatprep.subr.mxu0 0.0
        %415 = vmatpush1.msra.mxu0 0.0
        %416 = vmatprep.subr.mxu0 0.0
        %417 = vmatpush1.msra.mxu0 0.0
        %418 = vmatprep.subr.mxu0 0.0
        %419 = vmatpush1.msra.mxu0 0.0
        %420 = vmatprep.subr.mxu0 0.0
        %421 = vmatpush1.msra.mxu0 0.0
        %422 = vmatprep.mubr.f32.mxu0 0.0
        %423 = vmatmul.mubr.f32.gmra.mrb[0].mxu0 %v325
        %v424 = vpop.f32.mrb[0].mxu0
        %v425 = vadd.f32 0.0, %v424
        %v426 = vpop.f32.mrb[0].mxu0
        %v427 = vadd.f32 0.0, %v426
        %428 = vdwg.mxu0
        %v431 = vcombine.low %v425, %v427
        %v433 = vunpack.c.l.s4 1983009808
        %v434 = vunpack.c.0.s8 %v433
        %v435 = vlaneseq
        %v436 = vshrl.u32 %v435, 7
        %v437 = vsub.s32 %v434, %v436
        %v438 = vrot.slane %v431, %v437
        %v440 = vadd.f32 %v324, %v438
        %441 = vst [vmem:[#allocation2] sm:$0xf] %v440
        %p442 = scmp.eq.s32.totalorder %s30, 1
        // Predicated region
        $region53: #{tpu_custom_call.1} parent=39 // pred_check
          %p443 = pneg %p442
        $region54: #{tpu_custom_call.1} parent=39 // pred_check_branch
          %445 = sbr.rel (%p443) target = $region56
        $region55: #{tpu_custom_call.1} parent=39 // pred_region
          %v446 = vld [vmem:[#allocation2] sm:$0xf]
          %v447 = vld [vmem:[%s316] sm:$0x3]
          %v449 = vlaneseq
          %v450 = vshrl.u32 %v449, 7
          %v451 = vsub.s32 0, %v450
          %v452 = vrot.slane %v447, %v451
          %v453 = vlaneseq
          %v454 = vshrl.u32 %v453, 7
          %v455 = vsub.s32 1, %v454
          %v456 = vrot.slane %v447, %v455
          %v457 = vcombine.low %v452, %v456
          %v459 = vunpack.c.l.s4 1983009808
          %v460 = vunpack.c.0.s8 %v459
          %v461 = vlaneseq
          %v462 = vshrl.u32 %v461, 7
          %v463 = vsub.s32 %v460, %v462
          %v464 = vrot.slane %v457, %v463
          %v466 = vadd.f32 %v446, %v464
          %v467 = vld [vmem:[%s3] sm:$0x1]
          %v468 = vld [vmem:[%s4] sm:$0x1]
          %vm469 = vcmask 1041408
          %v470 = vsel %vm469, %v466, 0.0
          %471 = vadd.xlane.f32.xlu0 %v470
          %v472 = vpop.xlane.xlu0 %471
          %v473 = vrcp.pop 128.0
          %v474 = vmul.f32 %v472, %v473
          %v475 = vsub.f32 %v466, %v474
          %v476 = vmul.f32 %v475, %v475
          %v477 = vsel %vm469, %v476, 0.0
          %478 = vadd.xlane.f32.xlu0 %v477
          %v479 = vpop.xlane.xlu0 %478
          %v480 = vmul.f32 %v479, %v473
          %v481 = vadd.f32 %v480, 1e-05
          %v482 = vrsqrt.pop %v481
          %v483 = vmul.f32 %v475, %v482
          %v485 = vlaneseq
          %v486 = vshrl.u32 %v485, 7
          %v487 = vsub.s32 0, %v486
          %v488 = vrot.slane %v467, %v487
          %v490 = vmul.f32 %v483, %v488
          %v492 = vlaneseq
          %v493 = vshrl.u32 %v492, 7
          %v494 = vsub.s32 0, %v493
          %v495 = vrot.slane %v468, %v494
          %v497 = vadd.f32 %v490, %v495
          %498 = vst [vmem:[%s310] sm:$0x3] %v497
          %v501 = vunpack.c.l.s4 1983009808
          %v502 = vunpack.c.0.s8 %v501
          %v503 = vlaneseq
          %v504 = vshrl.u32 %v503, 7
          %v505 = vsub.s32 %v502, %v504
          %v506 = vrot.slane %v466, %v505
          %v507 = vcombine.high %v506, %v506
          %v509 = vsel %vm469, %v507, 0.0
          %510 = vadd.xlane.f32.xlu0 %v509
          %v511 = vpop.xlane.xlu0 %510
          %v512 = vmul.f32 %v511, %v473
          %v513 = vrot.slane %v466, 2
          %v515 = vsub.f32 %v513, %v512
          %v516 = vmul.f32 %v515, %v515
          %v517 = vsel %vm469, %v516, 0.0
          %518 = vadd.xlane.f32.xlu0 %v517
          %v519 = vpop.xlane.xlu0 %518
          %v520 = vmul.f32 %v519, %v473
          %v521 = vadd.f32 %v520, 1e-05
          %v522 = vrsqrt.pop %v521
          %v523 = vmul.f32 %v515, %v522
          %v524 = vmul.f32 %v523, %v488
          %v525 = vadd.f32 %v524, %v495
          %526 = vst [vmem:[%s310 + $0x2] sm:$0x3] %v525
        $region56: #{tpu_custom_call.1} parent=39 // pred_fallthru
          _
        %s527 = sand.u32 %s167, 1
        %s528 = scalar_lea.sflag [#allocation5], %s527
        %s529 = sand.u32 %s167, 1
        %s530 = smul.addr %s529, 4
        %s531 = scalar_lea.vmem [#allocation8], %s530
        // Predicated region
        $region57: #{tpu_custom_call.1} parent=39 // pred_check
          %p532 = pneg %p177
        $region58: #{tpu_custom_call.1} parent=39 // pred_check_branch
          %534 = sbr.rel (%p532) target = $region60
        $region59: #{tpu_custom_call.1} parent=39 // pred_region
          %s535 = smul.u32 2, %s29
          %s537 = ssub.s32 64, 64
          %538 = vsyncadd %s528, %s537
          %s539 = smul.addr %s535, 32
          %s540 = scalar_lea.hbm %s5, %s539
          %s542 = sshll.u32 %s531, 4
          %s543 = int_to_ptr.vmem [resolvable:$true] %s542
          %545 = dma.vmem_to_hbm [thread:$0]  %s543, 64, %s540, %s528
        $region60: #{tpu_custom_call.1} parent=39 // pred_fallthru
          _
      $region40: #{tpu_custom_call.1} parent=5 // pred_fallthru
        _
      %p546 = scmp.le.s32.totalorder 2, %s20
      // Predicated region
      $region61: #{tpu_custom_call.1} parent=5 // pred_check
        %p547 = pneg %p546
      $region62: #{tpu_custom_call.1} parent=5 // pred_check_branch
        %549 = sbr.rel (%p547) target = $region64
      $region63: #{tpu_custom_call.1} parent=5 // pred_region
        %s550 = ssub.s32 %s20, 2
        // Predicated region
        $region65: #{tpu_custom_call.1} parent=63 // pred_check
          %p551 = pneg %p183
        $region66: #{tpu_custom_call.1} parent=63 // pred_check_branch
          %553 = sbr.rel (%p551) target = $region68
        $region67: #{tpu_custom_call.1} parent=63 // pred_region
          %s554 = sand.u32 %s168, 1
          %s555 = scalar_lea.sflag [#allocation5], %s554
          %s556 = sand.u32 %s168, 1
          %s557 = smul.addr %s556, 4
          %s558 = scalar_lea.vmem [#allocation8], %s557
          %559 = dma.done %s555, 64
        $region68: #{tpu_custom_call.1} parent=63 // pred_fallthru
          _
      $region64: #{tpu_custom_call.1} parent=5 // pred_fallthru
        _
    $region6: #{tpu_custom_call.1} parent=1 // loop_footer
      %s24 = sadd.s32 1, %s20
    $region7: #{tpu_custom_call.1} parent=1 // loop_footer_branch
      %19 = sbr.rel target = $region3
    $region8: #{tpu_custom_call.1} parent=1 // loop_exit
      _
    %560 = vsyncpa [#allocation4], 1
    %s561 = scalar_lea.sflag [#allocation4], 1
    %562 = vsyncpa %s561, 1
    %563 = vsyncpa [#allocation7], 1
    %s564 = scalar_lea.sflag [#allocation7], 1
    %565 = vsyncpa %s564, 1
    %566 = vsyncpa [#allocation5], 1
    %s567 = scalar_lea.sflag [#allocation5], 1
    %568 = vsyncpa %s567, 1

</llo_original>
